<compile_context>
chip_gen: v7x
topology: tpu7x:2x2x1
jax: 0.10.0
libtpu: 0.0.40
codegen_flags: <defaults>
</compile_context>

<pallas_src>
import jax
import jax.numpy as jnp
from jax.experimental import pallas as pl
from jax.experimental.pallas import tpu as pltpu

_LANE = 128          # lane width (last dim)
_SUBLANE_BF16 = 16   # safe sublane granularity for bf16 blocks


def _round_up(x, m):
    return (x + m - 1) // m * m


# ----------------------------------------------------------------------------
# Kernel
# ----------------------------------------------------------------------------
def _rcanet_kernel(
    x1_ref, x2_ref,
    e1_w1_ref, e1_w2_ref,   # enc1: (F, Hp), (Hp, Rp)
    e2_w1_ref, e2_w2_ref,   # enc2: (F, Hp), (Hp, Rp)
    d1_w1_ref, d1_w2_ref,   # dec1: (Rp, Hp), (Hp, Fp)
    d2_w1_ref, d2_w2_ref,   # dec2: (Rp, Hp), (Hp, Fp)
    z1_ref, z2_ref, xh1_ref, xh2_ref,
):
    """One batch tile: two independent Linear->ReLU->Linear autoencoders (MXU/VPU)."""

    def mlp2(x, w1_ref, w2_ref):
        # Linear -> ReLU -> Linear (final MLPnet layer has no activation).
        h = jnp.dot(x, w1_ref[...], preferred_element_type=jnp.float32)
        h = jnp.maximum(h, 0.0)                              # ReLU on f32 accumulator
        return jnp.dot(h.astype(w2_ref.dtype), w2_ref[...],
                       preferred_element_type=jnp.float32)

    # f32 -> bf16 cast happens in-kernel (VPU); no separate XLA pad/cast pass and
    # no in-kernel feature padding needed (first-layer weight keeps raw K = F).
    x1 = x1_ref[...].astype(e1_w1_ref.dtype)
    x2 = x2_ref[...].astype(e2_w1_ref.dtype)

    z1 = mlp2(x1, e1_w1_ref, e1_w2_ref).astype(z1_ref.dtype)
    z1_ref[...] = z1                                          # decoder sees exactly this z
    xh1_ref[...] = mlp2(z1, d1_w1_ref, d1_w2_ref).astype(xh1_ref.dtype)

    z2 = mlp2(x2, e2_w1_ref, e2_w2_ref).astype(z2_ref.dtype)
    z2_ref[...] = z2
    xh2_ref[...] = mlp2(z2, d2_w1_ref, d2_w2_ref).astype(xh2_ref.dtype)


# ----------------------------------------------------------------------------
# One-time parameter preparation (hoisted out of the forward path)
# ----------------------------------------------------------------------------
def prepare_params(params, n_features, hidden, rep_dim, compute_dtype=jnp.bfloat16):
    """Transpose PyTorch (out,in) weights to (in,out), zero-pad only the dims that
    are matmul *output* lanes (H, R, F-as-output) to multiples of 128, cast once.

    Zero padding is exact here because bias=False and ReLU(0)=0: padded hidden /
    rep columns are exactly zero, so padded rows of the following layer's weight
    contribute nothing.  If biases or a non-ReLU activation were enabled this
    assumption would break.
    """
    # TODO(synk): only a single hidden layer (hidden_dims=[H]) is supported here;
    # multi-layer hidden_dims strings like '100,50' are not expanded.
    Fp = _round_up(n_features, _LANE)
    Hp = _round_up(hidden, _LANE)
    Rp = _round_up(rep_dim, _LANE)

    def prep(w_pt, rows, cols):
        w = w_pt.T  # (in, out)
        w = jnp.pad(w, ((0, rows - w.shape[0]), (0, cols - w.shape[1])))
        return jax.device_put(w.astype(compute_dtype))

    weights = (
        prep(params["enc1_w1"], n_features, Hp),   # contraction dim F left unpadded
        prep(params["enc1_w2"], Hp, Rp),
        prep(params["enc2_w1"], n_features, Hp),
        prep(params["enc2_w2"], Hp, Rp),
        prep(params["dec1_w1"], Rp, Hp),
        prep(params["dec1_w2"], Hp, Fp),
        prep(params["dec2_w1"], Rp, Hp),
        prep(params["dec2_w2"], Hp, Fp),
    )
    return {
        "weights": weights,
        "n_features": n_features, "hidden": hidden, "rep_dim": rep_dim,
        "Fp": Fp, "Hp": Hp, "Rp": Rp,
        "compute_dtype": compute_dtype,
    }


# ----------------------------------------------------------------------------
# Forward wrapper
# ----------------------------------------------------------------------------
def rcanet_forward(x1, x2, prepped, *, tb_max=1024):
    """Returns lane-padded bf16 outputs:
         z1, z2     : (B, Rp)  -- valid columns are [:rep_dim]
         xh1, xh2   : (B, Fp)  -- valid columns are [:n_features]
    Padded columns are exactly zero.  Use `unpad_outputs` (or slice inside the
    consumer's jit) if exact shapes are needed; keeping them padded avoids an
    extra XLA slice pass over the dominant byte stream.
    """
    F = prepped["n_features"]
    H = prepped["hidden"]
    R = prepped["rep_dim"]
    Fp, Hp, Rp = prepped["Fp"], prepped["Hp"], prepped["Rp"]
    cdt = prepped["compute_dtype"]
    weights = prepped["weights"]

    B = x1.shape[0]
    # Batch tile: big enough to amortize the ~0.35 us per-grid-step overhead,
    # >= 2 tiles for large batches (so both v7x TensorCores get work), never
    # (much) larger than the batch, and a multiple of 16 sublanes for bf16.
    TB = min(tb_max,
             _round_up(pl.cdiv(B, 2), 256),
             _round_up(B, _SUBLANE_BF16))
    TB = max(TB, _SUBLANE_BF16)
    n_tiles = pl.cdiv(B, TB)   # partial last tile handled by Pallas masking

    x_spec = pl.BlockSpec((TB, F), lambda i: (i, 0))   # last dim = full array dim
    z_spec = pl.BlockSpec((TB, Rp), lambda i: (i, 0))
    xh_spec = pl.BlockSpec((TB, Fp), lambda i: (i, 0))
    # Weights: full arrays, constant block index -> VMEM-resident across the grid.
    w_specs = [pl.BlockSpec(w.shape, lambda i: (0, 0)) for w in weights]

    out_shape = (
        jax.ShapeDtypeStruct((B, Rp), cdt),   # z1
        jax.ShapeDtypeStruct((B, Rp), cdt),   # z2
        jax.ShapeDtypeStruct((B, Fp), cdt),   # x_hat1
        jax.ShapeDtypeStruct((B, Fp), cdt),   # x_hat2
    )

    itemsize = jnp.dtype(cdt).itemsize
    weight_bytes = sum(int(w.size) for w in weights) * itemsize

    # Cost estimate from real (unpadded) model dims / actual transferred bytes.
    flops = 2 * 2 * B * (F * H + H * R + R * H + H * F)
    bytes_accessed = (
        2 * B * F * 4                           # x1, x2 (f32, unpadded)
        + weight_bytes
        + 2 * B * Rp * itemsize                 # z1, z2 (bf16)
        + 2 * B * Fp * itemsize                 # x_hat1, x_hat2 (bf16)
    )

    # VMEM: double-buffered input/output tiles + double-buffered weights + headroom
    # for f32 intermediates / spills.  Floor at 16 MiB (never below any scoped
    # default), cap at v7x's 64 MiB physical VMEM.
    in_tile_bytes = 2 * TB * F * 4
    out_tile_bytes = 2 * TB * (Rp + Fp) * itemsize
    vmem_bytes = (2 * (in_tile_bytes + out_tile_bytes + weight_bytes)
                  + 6 * TB * Hp * 4 + (4 << 20))
    vmem_limit = min(max(_round_up(vmem_bytes, 1 << 20), 16 << 20), 64 << 20)

    z1, z2, xh1, xh2 = pl.pallas_call(
        _rcanet_kernel,
        out_shape=out_shape,
        grid=(n_tiles,),
        in_specs=[x_spec, x_spec] + w_specs,
        out_specs=(z_spec, z_spec, xh_spec, xh_spec),
        compiler_params=pltpu.CompilerParams(
            dimension_semantics=("parallel",),    # megacore sharding on v7x
            vmem_limit_bytes=int(vmem_limit),
        ),
        cost_estimate=pl.CostEstimate(
            flops=int(flops), transcendentals=0,
            bytes_accessed=int(bytes_accessed)),
    )(x1, x2, *weights)

    return z1, z2, xh1, xh2


def unpad_outputs(outputs, prepped):
    """Strip lane padding (only needed if the consumer requires exact shapes)."""
    z1, z2, xh1, xh2 = outputs
    R, F = prepped["rep_dim"], prepped["n_features"]
    return z1[:, :R], z2[:, :R], xh1[:, :F], xh2[:, :F]


# ----------------------------------------------------------------------------
# Synthetic init + pure-JAX reference
# ----------------------------------------------------------------------------
def init_params(key, n_features, hidden, rep_dim):
    """Deterministic synthetic init, PyTorch Linear layout (out, in), bias=False."""
    ks = jax.random.split(key, 8)
    scale = 0.1

    def w(k, out_f, in_f):
        return scale * jax.random.normal(k, (out_f, in_f), dtype=jnp.float32)

    return {
        "enc1_w1": w(ks[0], hidden, n_features),
        "enc1_w2": w(ks[1], rep_dim, hidden),
        "enc2_w1": w(ks[2], hidden, n_features),
        "enc2_w2": w(ks[3], rep_dim, hidden),
        "dec1_w1": w(ks[4], hidden, rep_dim),
        "dec1_w2": w(ks[5], n_features, hidden),
        "dec2_w1": w(ks[6], hidden, rep_dim),
        "dec2_w2": w(ks[7], n_features, hidden),
    }


def _reference_forward(x1, x2, p):
    """Pure-JAX (f32) reference mirroring the PyTorch module."""
    def mlp(x, w1, w2):
        return jnp.maximum(x @ w1.T, 0.0) @ w2.T
    z1 = mlp(x1, p["enc1_w1"], p["enc1_w2"])
    z2 = mlp(x2, p["enc2_w1"], p["enc2_w2"])
    xh1 = mlp(z1, p["dec1_w1"], p["dec1_w2"])
    xh2 = mlp(z2, p["dec2_w1"], p["dec2_w2"])
    return z1, z2, xh1, xh2


if __name__ == "__main__":
    batch, n_features, hidden, rep_dim = 2, 16, 32, 8

    key = jax.random.PRNGKey(0)
    kx1, kx2, kp = jax.random.split(key, 3)
    x1 = jax.random.normal(kx1, (batch, n_features), dtype=jnp.float32)
    x2 = jax.random.normal(kx2, (batch, n_features), dtype=jnp.float32)
    params = init_params(kp, n_features, hidden, rep_dim)

    prepped = prepare_params(params, n_features, hidden, rep_dim)
    fwd = jax.jit(lambda a, b: rcanet_forward(a, b, prepped))

    outs = jax.block_until_ready(fwd(x1, x2))
    z1, z2, xh1, xh2 = unpad_outputs(outs, prepped)   # slicing only for the check

    # Correctness check against pure-JAX f32 reference.  Tolerance accounts for
    # bf16 operands + bf16 outputs (f32 accumulation throughout).
    rz1, rz2, rxh1, rxh2 = _reference_forward(x1, x2, params)
    for got, want, name in ((z1, rz1, "z1"), (z2, rz2, "z2"),
                            (xh1, rxh1, "x_hat1"), (xh2, rxh2, "x_hat2")):
        assert got.shape == want.shape, f"{name} shape mismatch"
        assert jnp.allclose(got.astype(jnp.float32), want,
                            atol=3e-2, rtol=3e-2), f"{name} mismatch"

    print("KERNEL_OK")
</pallas_src>

<mosaic_0001>
module attributes {stable_mosaic.version = 11 : i64} {
  func.func @_rcanet_kernel(%arg0: i32, %arg1: memref<16x16xf32, #tpu.memory_space<vmem>>, %arg2: memref<16x16xf32, #tpu.memory_space<vmem>>, %arg3: memref<16x128xbf16, #tpu.memory_space<vmem>>, %arg4: memref<128x128xbf16, #tpu.memory_space<vmem>>, %arg5: memref<16x128xbf16, #tpu.memory_space<vmem>>, %arg6: memref<128x128xbf16, #tpu.memory_space<vmem>>, %arg7: memref<128x128xbf16, #tpu.memory_space<vmem>>, %arg8: memref<128x128xbf16, #tpu.memory_space<vmem>>, %arg9: memref<128x128xbf16, #tpu.memory_space<vmem>>, %arg10: memref<128x128xbf16, #tpu.memory_space<vmem>>, %arg11: memref<16x128xbf16, #tpu.memory_space<vmem>>, %arg12: memref<16x128xbf16, #tpu.memory_space<vmem>>, %arg13: memref<16x128xbf16, #tpu.memory_space<vmem>>, %arg14: memref<16x128xbf16, #tpu.memory_space<vmem>>) attributes {dimension_semantics = [#tpu.dimension_semantics<parallel>], iteration_bounds = array<i64: 1>, scalar_prefetch = 0 : i64, scratch_operands = 0 : i64, tpu.core_type = #tpu.core_type<tc>, window_params = [{transform_indices = @transform_0, window_bounds = array<i64: 16, 16>}, {transform_indices = @transform_1, window_bounds = array<i64: 16, 16>}, {pipeline_mode = #tpu.pipeline_mode<synchronous>, transform_indices = @transform_2, window_bounds = array<i64: 16, 128>}, {pipeline_mode = #tpu.pipeline_mode<synchronous>, transform_indices = @transform_3, window_bounds = array<i64: 128, 128>}, {pipeline_mode = #tpu.pipeline_mode<synchronous>, transform_indices = @transform_4, window_bounds = array<i64: 16, 128>}, {pipeline_mode = #tpu.pipeline_mode<synchronous>, transform_indices = @transform_5, window_bounds = array<i64: 128, 128>}, {pipeline_mode = #tpu.pipeline_mode<synchronous>, transform_indices = @transform_6, window_bounds = array<i64: 128, 128>}, {pipeline_mode = #tpu.pipeline_mode<synchronous>, transform_indices = @transform_7, window_bounds = array<i64: 128, 128>}, {pipeline_mode = #tpu.pipeline_mode<synchronous>, transform_indices = @transform_8, window_bounds = array<i64: 128, 128>}, {pipeline_mode = #tpu.pipeline_mode<synchronous>, transform_indices = @transform_9, window_bounds = array<i64: 128, 128>}, {transform_indices = @transform_10, window_bounds = array<i64: 16, 128>}, {transform_indices = @transform_11, window_bounds = array<i64: 16, 128>}, {transform_indices = @transform_12, window_bounds = array<i64: 16, 128>}, {transform_indices = @transform_13, window_bounds = array<i64: 16, 128>}]} {
    %c0 = arith.constant 0 : index
    %c0_0 = arith.constant 0 : index
    %0 = vector.load %arg1[%c0, %c0_0] : memref<16x16xf32, #tpu.memory_space<vmem>>, vector<16x16xf32>
    %1 = arith.truncf %0 : vector<16x16xf32> to vector<16x16xbf16>
    %c0_1 = arith.constant 0 : index
    %c0_2 = arith.constant 0 : index
    %2 = vector.load %arg2[%c0_1, %c0_2] : memref<16x16xf32, #tpu.memory_space<vmem>>, vector<16x16xf32>
    %3 = arith.truncf %2 : vector<16x16xf32> to vector<16x16xbf16>
    %c0_3 = arith.constant 0 : index
    %c0_4 = arith.constant 0 : index
    %4 = vector.load %arg3[%c0_3, %c0_4] : memref<16x128xbf16, #tpu.memory_space<vmem>>, vector<16x128xbf16>
    %cst = arith.constant dense<0.000000e+00> : vector<16x128xf32>
    %5 = tpu.matmul %1, %4, %cst {dimension_numbers = #tpu.dot_dimension_numbers<[1], [0], [0], [1], [0, 0, 1, 1], [], []>} : vector<16x16xbf16>, vector<16x128xbf16>, vector<16x128xf32> -> vector<16x128xf32>
    %cst_5 = arith.constant 0.000000e+00 : f32
    %6 = vector.broadcast %cst_5 : f32 to vector<16x128xf32>
    %7 = arith.maximumf %5, %6 : vector<16x128xf32>
    %8 = arith.truncf %7 : vector<16x128xf32> to vector<16x128xbf16>
    %c0_6 = arith.constant 0 : index
    %c0_7 = arith.constant 0 : index
    %9 = vector.load %arg4[%c0_6, %c0_7] : memref<128x128xbf16, #tpu.memory_space<vmem>>, vector<128x128xbf16>
    %cst_8 = arith.constant dense<0.000000e+00> : vector<16x128xf32>
    %10 = tpu.matmul %8, %9, %cst_8 {dimension_numbers = #tpu.dot_dimension_numbers<[1], [0], [0], [1], [0, 0, 1, 1], [], []>} : vector<16x128xbf16>, vector<128x128xbf16>, vector<16x128xf32> -> vector<16x128xf32>
    %11 = arith.truncf %10 : vector<16x128xf32> to vector<16x128xbf16>
    %c0_9 = arith.constant 0 : index
    %c0_10 = arith.constant 0 : index
    %12 = vector.load %arg11[%c0_9, %c0_10] : memref<16x128xbf16, #tpu.memory_space<vmem>>, vector<16x128xbf16>
    tpu.vector_store %arg11[%c0_9, %c0_10], %11 {strides = array<i32>} : memref<16x128xbf16, #tpu.memory_space<vmem>>, vector<16x128xbf16>,
    %c0_11 = arith.constant 0 : index
    %c0_12 = arith.constant 0 : index
    %13 = vector.load %arg7[%c0_11, %c0_12] : memref<128x128xbf16, #tpu.memory_space<vmem>>, vector<128x128xbf16>
    %cst_13 = arith.constant dense<0.000000e+00> : vector<16x128xf32>
    %14 = tpu.matmul %11, %13, %cst_13 {dimension_numbers = #tpu.dot_dimension_numbers<[1], [0], [0], [1], [0, 0, 1, 1], [], []>} : vector<16x128xbf16>, vector<128x128xbf16>, vector<16x128xf32> -> vector<16x128xf32>
    %cst_14 = arith.constant 0.000000e+00 : f32
    %15 = vector.broadcast %cst_14 : f32 to vector<16x128xf32>
    %16 = arith.maximumf %14, %15 : vector<16x128xf32>
    %17 = arith.truncf %16 : vector<16x128xf32> to vector<16x128xbf16>
    %c0_15 = arith.constant 0 : index
    %c0_16 = arith.constant 0 : index
    %18 = vector.load %arg8[%c0_15, %c0_16] : memref<128x128xbf16, #tpu.memory_space<vmem>>, vector<128x128xbf16>
    %cst_17 = arith.constant dense<0.000000e+00> : vector<16x128xf32>
    %19 = tpu.matmul %17, %18, %cst_17 {dimension_numbers = #tpu.dot_dimension_numbers<[1], [0], [0], [1], [0, 0, 1, 1], [], []>} : vector<16x128xbf16>, vector<128x128xbf16>, vector<16x128xf32> -> vector<16x128xf32>
    %20 = arith.truncf %19 : vector<16x128xf32> to vector<16x128xbf16>
    %c0_18 = arith.constant 0 : index
    %c0_19 = arith.constant 0 : index
    %21 = vector.load %arg13[%c0_18, %c0_19] : memref<16x128xbf16, #tpu.memory_space<vmem>>, vector<16x128xbf16>
    tpu.vector_store %arg13[%c0_18, %c0_19], %20 {strides = array<i32>} : memref<16x128xbf16, #tpu.memory_space<vmem>>, vector<16x128xbf16>,
    %c0_20 = arith.constant 0 : index
    %c0_21 = arith.constant 0 : index
    %22 = vector.load %arg5[%c0_20, %c0_21] : memref<16x128xbf16, #tpu.memory_space<vmem>>, vector<16x128xbf16>
    %cst_22 = arith.constant dense<0.000000e+00> : vector<16x128xf32>
    %23 = tpu.matmul %3, %22, %cst_22 {dimension_numbers = #tpu.dot_dimension_numbers<[1], [0], [0], [1], [0, 0, 1, 1], [], []>} : vector<16x16xbf16>, vector<16x128xbf16>, vector<16x128xf32> -> vector<16x128xf32>
    %cst_23 = arith.constant 0.000000e+00 : f32
    %24 = vector.broadcast %cst_23 : f32 to vector<16x128xf32>
    %25 = arith.maximumf %23, %24 : vector<16x128xf32>
    %26 = arith.truncf %25 : vector<16x128xf32> to vector<16x128xbf16>
    %c0_24 = arith.constant 0 : index
    %c0_25 = arith.constant 0 : index
    %27 = vector.load %arg6[%c0_24, %c0_25] : memref<128x128xbf16, #tpu.memory_space<vmem>>, vector<128x128xbf16>
    %cst_26 = arith.constant dense<0.000000e+00> : vector<16x128xf32>
    %28 = tpu.matmul %26, %27, %cst_26 {dimension_numbers = #tpu.dot_dimension_numbers<[1], [0], [0], [1], [0, 0, 1, 1], [], []>} : vector<16x128xbf16>, vector<128x128xbf16>, vector<16x128xf32> -> vector<16x128xf32>
    %29 = arith.truncf %28 : vector<16x128xf32> to vector<16x128xbf16>
    %c0_27 = arith.constant 0 : index
    %c0_28 = arith.constant 0 : index
    %30 = vector.load %arg12[%c0_27, %c0_28] : memref<16x128xbf16, #tpu.memory_space<vmem>>, vector<16x128xbf16>
    tpu.vector_store %arg12[%c0_27, %c0_28], %29 {strides = array<i32>} : memref<16x128xbf16, #tpu.memory_space<vmem>>, vector<16x128xbf16>,
    %c0_29 = arith.constant 0 : index
    %c0_30 = arith.constant 0 : index
    %31 = vector.load %arg9[%c0_29, %c0_30] : memref<128x128xbf16, #tpu.memory_space<vmem>>, vector<128x128xbf16>
    %cst_31 = arith.constant dense<0.000000e+00> : vector<16x128xf32>
    %32 = tpu.matmul %29, %31, %cst_31 {dimension_numbers = #tpu.dot_dimension_numbers<[1], [0], [0], [1], [0, 0, 1, 1], [], []>} : vector<16x128xbf16>, vector<128x128xbf16>, vector<16x128xf32> -> vector<16x128xf32>
    %cst_32 = arith.constant 0.000000e+00 : f32
    %33 = vector.broadcast %cst_32 : f32 to vector<16x128xf32>
    %34 = arith.maximumf %32, %33 : vector<16x128xf32>
    %35 = arith.truncf %34 : vector<16x128xf32> to vector<16x128xbf16>
    %c0_33 = arith.constant 0 : index
    %c0_34 = arith.constant 0 : index
    %36 = vector.load %arg10[%c0_33, %c0_34] : memref<128x128xbf16, #tpu.memory_space<vmem>>, vector<128x128xbf16>
    %cst_35 = arith.constant dense<0.000000e+00> : vector<16x128xf32>
    %37 = tpu.matmul %35, %36, %cst_35 {dimension_numbers = #tpu.dot_dimension_numbers<[1], [0], [0], [1], [0, 0, 1, 1], [], []>} : vector<16x128xbf16>, vector<128x128xbf16>, vector<16x128xf32> -> vector<16x128xf32>
    %38 = arith.truncf %37 : vector<16x128xf32> to vector<16x128xbf16>
    %c0_36 = arith.constant 0 : index
    %c0_37 = arith.constant 0 : index
    %39 = vector.load %arg14[%c0_36, %c0_37] : memref<16x128xbf16, #tpu.memory_space<vmem>>, vector<16x128xbf16>
    tpu.vector_store %arg14[%c0_36, %c0_37], %38 {strides = array<i32>} : memref<16x128xbf16, #tpu.memory_space<vmem>>, vector<16x128xbf16>,
    return
  }
  func.func @transform_0(%arg0: i32) -> (i32, i32) {
    %c0_i32 = arith.constant 0 : i32
    %c0_i32_0 = arith.constant 0 : i32
    return %arg0, %c0_i32 : i32, i32
  }
  func.func @transform_1(%arg0: i32) -> (i32, i32) {
    %c0_i32 = arith.constant 0 : i32
    %c0_i32_0 = arith.constant 0 : i32
    return %arg0, %c0_i32 : i32, i32
  }
  func.func @transform_2(%arg0: i32) -> (i32, i32) {
    %c0_i32 = arith.constant 0 : i32
    %c0_i32_0 = arith.constant 0 : i32
    %c0_i32_1 = arith.constant 0 : i32
    return %c0_i32, %c0_i32_0 : i32, i32
  }
  func.func @transform_3(%arg0: i32) -> (i32, i32) {
    %c0_i32 = arith.constant 0 : i32
    %c0_i32_0 = arith.constant 0 : i32
    %c0_i32_1 = arith.constant 0 : i32
    return %c0_i32, %c0_i32_0 : i32, i32
  }
  func.func @transform_4(%arg0: i32) -> (i32, i32) {
    %c0_i32 = arith.constant 0 : i32
    %c0_i32_0 = arith.constant 0 : i32
    %c0_i32_1 = arith.constant 0 : i32
    return %c0_i32, %c0_i32_0 : i32, i32
  }
  func.func @transform_5(%arg0: i32) -> (i32, i32) {
    %c0_i32 = arith.constant 0 : i32
    %c0_i32_0 = arith.constant 0 : i32
    %c0_i32_1 = arith.constant 0 : i32
    return %c0_i32, %c0_i32_0 : i32, i32
  }
  func.func @transform_6(%arg0: i32) -> (i32, i32) {
    %c0_i32 = arith.constant 0 : i32
    %c0_i32_0 = arith.constant 0 : i32
    %c0_i32_1 = arith.constant 0 : i32
    return %c0_i32, %c0_i32_0 : i32, i32
  }
  func.func @transform_7(%arg0: i32) -> (i32, i32) {
    %c0_i32 = arith.constant 0 : i32
    %c0_i32_0 = arith.constant 0 : i32
    %c0_i32_1 = arith.constant 0 : i32
    return %c0_i32, %c0_i32_0 : i32, i32
  }
  func.func @transform_8(%arg0: i32) -> (i32, i32) {
    %c0_i32 = arith.constant 0 : i32
    %c0_i32_0 = arith.constant 0 : i32
    %c0_i32_1 = arith.constant 0 : i32
    return %c0_i32, %c0_i32_0 : i32, i32
  }
  func.func @transform_9(%arg0: i32) -> (i32, i32) {
    %c0_i32 = arith.constant 0 : i32
    %c0_i32_0 = arith.constant 0 : i32
    %c0_i32_1 = arith.constant 0 : i32
    return %c0_i32, %c0_i32_0 : i32, i32
  }
  func.func @transform_10(%arg0: i32) -> (i32, i32) {
    %c0_i32 = arith.constant 0 : i32
    %c0_i32_0 = arith.constant 0 : i32
    return %arg0, %c0_i32 : i32, i32
  }
  func.func @transform_11(%arg0: i32) -> (i32, i32) {
    %c0_i32 = arith.constant 0 : i32
    %c0_i32_0 = arith.constant 0 : i32
    return %arg0, %c0_i32 : i32, i32
  }
  func.func @transform_12(%arg0: i32) -> (i32, i32) {
    %c0_i32 = arith.constant 0 : i32
    %c0_i32_0 = arith.constant 0 : i32
    return %arg0, %c0_i32 : i32, i32
  }
  func.func @transform_13(%arg0: i32) -> (i32, i32) {
    %c0_i32 = arith.constant 0 : i32
    %c0_i32_0 = arith.constant 0 : i32
    return %arg0, %c0_i32 : i32, i32
  }
}

</mosaic_0001>

<llo_original>
// kernel: _lambda_.1
$region0: #{_lambda_.1}
  #allocation0 [shape = 'u32[]', space=smem, size = 0x4, offset = 0x4, fixed_abs, tag = 'smem constant byte address 0x4 - core index']
  #allocation1 [shape = 'u32[144,128]{1,0:T(1,128)}', space=vmem, size = 0x12000, scoped, tag = 'internal scratch']
  %s0 = inlined_call_operand.hbm [shape: f32[2,16], index: 0, kind: input, shape index: {}]
  %s1 = inlined_call_operand.hbm [shape: f32[2,16], index: 1, kind: input, shape index: {}]
  %s2 = inlined_call_operand.hbm [shape: bf16[16,128], index: 2, kind: input, shape index: {}]
  %s3 = inlined_call_operand.hbm [shape: bf16[128,128], index: 3, kind: input, shape index: {}]
  %s4 = inlined_call_operand.hbm [shape: bf16[16,128], index: 4, kind: input, shape index: {}]
  %s5 = inlined_call_operand.hbm [shape: bf16[128,128], index: 5, kind: input, shape index: {}]
  %s6 = inlined_call_operand.hbm [shape: bf16[128,128], index: 6, kind: input, shape index: {}]
  %s7 = inlined_call_operand.hbm [shape: bf16[128,128], index: 7, kind: input, shape index: {}]
  %s8 = inlined_call_operand.hbm [shape: bf16[128,128], index: 8, kind: input, shape index: {}]
  %s9 = inlined_call_operand.vmem [shape: bf16[128,128], index: 9, kind: input, shape index: {}]
  %s10 = inlined_call_operand.hbm [shape: bf16[2,128], index: 10, kind: output, shape index: {0}]
  %s11 = inlined_call_operand.hbm [shape: bf16[2,128], index: 11, kind: output, shape index: {1}]
  %s12 = inlined_call_operand.hbm [shape: bf16[2,128], index: 12, kind: output, shape index: {2}]
  %s13 = inlined_call_operand.hbm [shape: bf16[2,128], index: 13, kind: output, shape index: {3}]
  %14 = xla_tuple %s10, %s11, %s12, %s13
  %s15 = sld [smem:[#allocation0]]
  $region110: #{_lambda_.1} parent=0
    _
  %s17 = ssub.s32 1, %s15
  %s18 = scalar_select 0, %s17, %s15
  $region1: #{_lambda_.1} parent=0
    #allocation2 [shape = 'u8[8192]{0}', space=vmem, size = 0x2000, scoped, tag = 'input window, operand 0, single buffered']
    #allocation3 [shape = 's32[1]{0}', space=sflag, size = 0x4, scoped, tag = 'scoped memory for _lambda_.1']
    #allocation4 [shape = 's32[1]{0}', space=sflag, size = 0x4, scoped, tag = 'scoped memory for _lambda_.1']
    #allocation5 [shape = 'u8[8192]{0}', space=vmem, size = 0x2000, scoped, tag = 'input window, operand 1, single buffered']
    #allocation6 [shape = 's32[1]{0}', space=sflag, size = 0x4, scoped, tag = 'scoped memory for _lambda_.1']
    #allocation7 [shape = 'u8[4096]{0}', space=vmem, size = 0x1000, scoped, tag = 'input window, operand 2, single buffered']
    #allocation8 [shape = 'u8[32768]{0}', space=vmem, size = 0x8000, scoped, tag = 'input window, operand 3, single buffered']
    #allocation9 [shape = 's32[1]{0}', space=sflag, size = 0x4, scoped, tag = 'scoped memory for _lambda_.1']
    #allocation10 [shape = 'u8[4096]{0}', space=vmem, size = 0x1000, scoped, tag = 'input window, operand 4, single buffered']
    #allocation11 [shape = 'u8[32768]{0}', space=vmem, size = 0x8000, scoped, tag = 'input window, operand 5, single buffered']
    #allocation12 [shape = 's32[1]{0}', space=sflag, size = 0x4, scoped, tag = 'scoped memory for _lambda_.1']
    #allocation13 [shape = 'u8[32768]{0}', space=vmem, size = 0x8000, scoped, tag = 'input window, operand 6, single buffered']
    #allocation14 [shape = 'u8[32768]{0}', space=vmem, size = 0x8000, scoped, tag = 'input window, operand 7, single buffered']
    #allocation15 [shape = 's32[1]{0}', space=sflag, size = 0x4, scoped, tag = 'scoped memory for _lambda_.1']
    #allocation16 [shape = 'u8[32768]{0}', space=vmem, size = 0x8000, scoped, tag = 'input window, operand 8, single buffered']
    #allocation17 [shape = 'u8[4096]{0}', space=vmem, size = 0x1000, scoped, tag = 'output window, operand 0, single buffered']
    #allocation18 [shape = 'u8[4096]{0}', space=vmem, size = 0x1000, scoped, tag = 'output window, operand 1, single buffered']
    #allocation19 [shape = 's32[1]{0}', space=sflag, size = 0x4, scoped, tag = 'scoped memory for _lambda_.1']
    #allocation20 [shape = 'u8[4096]{0}', space=vmem, size = 0x1000, scoped, tag = 'output window, operand 2, single buffered']
    #allocation21 [shape = 'u8[4096]{0}', space=vmem, size = 0x1000, scoped, tag = 'output window, operand 3, single buffered']
    #allocation22 [shape = 's32[1]{0}', space=sflag, size = 0x4, scoped, tag = 'scoped memory for _lambda_.1']
    %19 = vsyncpa [#allocation3], 0
    %20 = vsyncpa [#allocation6], 0
    %21 = vsyncpa [#allocation9], 0
    %22 = vsyncpa [#allocation12], 0
    %23 = vsyncpa [#allocation15], 0
    %24 = vsyncpa [#allocation4], 0
    %25 = vsyncpa [#allocation19], 0
    %26 = vsyncpa [#allocation22], 0
    // Predicated region
    $region2: #{_lambda_.1} parent=1 // pred_check
      _
    $region3: #{_lambda_.1} parent=1 // pred_check_branch
      %28 = sbr.rel (0) target = $region5
    $region4: #{_lambda_.1} parent=1 // pred_region
      %s30 = ssub.s32 256, 32
      %31 = vsyncadd [#allocation3], %s30
      %s32 = sshll.u32 [#allocation2], 4
      %s33 = int_to_ptr.vmem [resolvable:$true] %s32
      %38 = dma.hbm_to_vmem [thread:$0]  %s0, 32, %s33, [#allocation3], 32, 32, 2
    $region5: #{_lambda_.1} parent=1 // pred_fallthru
      _
    // Predicated region
    $region6: #{_lambda_.1} parent=1 // pred_check
      _
    $region7: #{_lambda_.1} parent=1 // pred_check_branch
      %40 = sbr.rel (0) target = $region9
    $region8: #{_lambda_.1} parent=1 // pred_region
      %s42 = ssub.s32 256, 32
      %43 = vsyncadd [#allocation6], %s42
      %s44 = sshll.u32 [#allocation5], 4
      %s45 = int_to_ptr.vmem [resolvable:$true] %s44
      %50 = dma.hbm_to_vmem [thread:$0]  %s1, 32, %s45, [#allocation6], 32, 32, 2
    $region9: #{_lambda_.1} parent=1 // pred_fallthru
      _
    // Predicated region
    $region10: #{_lambda_.1} parent=1 // pred_check
      _
    $region11: #{_lambda_.1} parent=1 // pred_check_branch
      %52 = sbr.rel (0) target = $region13
    $region12: #{_lambda_.1} parent=1 // pred_region
      %s54 = ssub.s32 128, 128
      %55 = vsyncadd [#allocation6], %s54
      %s56 = sshll.u32 [#allocation7], 4
      %s57 = int_to_ptr.vmem [resolvable:$true] %s56
      %62 = dma.hbm_to_vmem [thread:$0]  %s2, 128, %s57, [#allocation6], 64, 64, 4
    $region13: #{_lambda_.1} parent=1 // pred_fallthru
      _
    // Predicated region
    $region14: #{_lambda_.1} parent=1 // pred_check
      _
    $region15: #{_lambda_.1} parent=1 // pred_check_branch
      %64 = sbr.rel (0) target = $region17
    $region16: #{_lambda_.1} parent=1 // pred_region
      %s66 = ssub.s32 1024, 1024
      %67 = vsyncadd [#allocation9], %s66
      %s68 = sshll.u32 [#allocation8], 4
      %s69 = int_to_ptr.vmem [resolvable:$true] %s68
      %74 = dma.hbm_to_vmem [thread:$0]  %s3, 1024, %s69, [#allocation9], 64, 64, 4
    $region17: #{_lambda_.1} parent=1 // pred_fallthru
      _
    // Predicated region
    $region18: #{_lambda_.1} parent=1 // pred_check
      _
    $region19: #{_lambda_.1} parent=1 // pred_check_branch
      %76 = sbr.rel (0) target = $region21
    $region20: #{_lambda_.1} parent=1 // pred_region
      %s78 = ssub.s32 128, 128
      %79 = vsyncadd [#allocation9], %s78
      %s80 = sshll.u32 [#allocation10], 4
      %s81 = int_to_ptr.vmem [resolvable:$true] %s80
      %86 = dma.hbm_to_vmem [thread:$0]  %s4, 128, %s81, [#allocation9], 64, 64, 4
    $region21: #{_lambda_.1} parent=1 // pred_fallthru
      _
    // Predicated region
    $region22: #{_lambda_.1} parent=1 // pred_check
      _
    $region23: #{_lambda_.1} parent=1 // pred_check_branch
      %88 = sbr.rel (0) target = $region25
    $region24: #{_lambda_.1} parent=1 // pred_region
      %s90 = ssub.s32 1024, 1024
      %91 = vsyncadd [#allocation12], %s90
      %s92 = sshll.u32 [#allocation11], 4
      %s93 = int_to_ptr.vmem [resolvable:$true] %s92
      %98 = dma.hbm_to_vmem [thread:$0]  %s5, 1024, %s93, [#allocation12], 64, 64, 4
    $region25: #{_lambda_.1} parent=1 // pred_fallthru
      _
    // Predicated region
    $region26: #{_lambda_.1} parent=1 // pred_check
      _
    $region27: #{_lambda_.1} parent=1 // pred_check_branch
      %100 = sbr.rel (0) target = $region29
    $region28: #{_lambda_.1} parent=1 // pred_region
      %s102 = ssub.s32 1024, 1024
      %103 = vsyncadd [#allocation12], %s102
      %s104 = sshll.u32 [#allocation13], 4
      %s105 = int_to_ptr.vmem [resolvable:$true] %s104
      %110 = dma.hbm_to_vmem [thread:$0]  %s6, 1024, %s105, [#allocation12], 64, 64, 4
    $region29: #{_lambda_.1} parent=1 // pred_fallthru
      _
    // Predicated region
    $region30: #{_lambda_.1} parent=1 // pred_check
      _
    $region31: #{_lambda_.1} parent=1 // pred_check_branch
      %112 = sbr.rel (0) target = $region33
    $region32: #{_lambda_.1} parent=1 // pred_region
      %s114 = ssub.s32 1024, 1024
      %115 = vsyncadd [#allocation15], %s114
      %s116 = sshll.u32 [#allocation14], 4
      %s117 = int_to_ptr.vmem [resolvable:$true] %s116
      %122 = dma.hbm_to_vmem [thread:$0]  %s7, 1024, %s117, [#allocation15], 64, 64, 4
    $region33: #{_lambda_.1} parent=1 // pred_fallthru
      _
    // Predicated region
    $region34: #{_lambda_.1} parent=1 // pred_check
      _
    $region35: #{_lambda_.1} parent=1 // pred_check_branch
      %124 = sbr.rel (0) target = $region37
    $region36: #{_lambda_.1} parent=1 // pred_region
      %s126 = ssub.s32 1024, 1024
      %127 = vsyncadd [#allocation15], %s126
      %s128 = sshll.u32 [#allocation16], 4
      %s129 = int_to_ptr.vmem [resolvable:$true] %s128
      %134 = dma.hbm_to_vmem [thread:$0]  %s8, 1024, %s129, [#allocation15], 64, 64, 4
    $region37: #{_lambda_.1} parent=1 // pred_fallthru
      _
    // Predicated region
    $region38: #{_lambda_.1} parent=1 // pred_check
      _
    $region39: #{_lambda_.1} parent=1 // pred_check_branch
      %136 = sbr.rel (0) target = $region41
    $region40: #{_lambda_.1} parent=1 // pred_region
      _
    $region41: #{_lambda_.1} parent=1 // pred_fallthru
      _
    // Predicated region
    $region42: #{_lambda_.1} parent=1 // pred_check
      _
    $region43: #{_lambda_.1} parent=1 // pred_check_branch
      %138 = sbr.rel (0) target = $region45
    $region44: #{_lambda_.1} parent=1 // pred_region
      %139 = dma.done [#allocation3], 256
    $region45: #{_lambda_.1} parent=1 // pred_fallthru
      _
    // Predicated region
    $region46: #{_lambda_.1} parent=1 // pred_check
      _
    $region47: #{_lambda_.1} parent=1 // pred_check_branch
      %141 = sbr.rel (0) target = $region49
    $region48: #{_lambda_.1} parent=1 // pred_region
      %142 = dma.done [#allocation6], 256
    $region49: #{_lambda_.1} parent=1 // pred_fallthru
      _
    // Predicated region
    $region50: #{_lambda_.1} parent=1 // pred_check
      _
    $region51: #{_lambda_.1} parent=1 // pred_check_branch
      %144 = sbr.rel (0) target = $region53
    $region52: #{_lambda_.1} parent=1 // pred_region
      %145 = dma.done [#allocation6], 128
    $region53: #{_lambda_.1} parent=1 // pred_fallthru
      _
    // Predicated region
    $region54: #{_lambda_.1} parent=1 // pred_check
      _
    $region55: #{_lambda_.1} parent=1 // pred_check_branch
      %147 = sbr.rel (0) target = $region57
    $region56: #{_lambda_.1} parent=1 // pred_region
      %148 = dma.done [#allocation9], 1024
    $region57: #{_lambda_.1} parent=1 // pred_fallthru
      _
    // Predicated region
    $region58: #{_lambda_.1} parent=1 // pred_check
      _
    $region59: #{_lambda_.1} parent=1 // pred_check_branch
      %150 = sbr.rel (0) target = $region61
    $region60: #{_lambda_.1} parent=1 // pred_region
      %151 = dma.done [#allocation9], 128
    $region61: #{_lambda_.1} parent=1 // pred_fallthru
      _
    // Predicated region
    $region62: #{_lambda_.1} parent=1 // pred_check
      _
    $region63: #{_lambda_.1} parent=1 // pred_check_branch
      %153 = sbr.rel (0) target = $region65
    $region64: #{_lambda_.1} parent=1 // pred_region
      %154 = dma.done [#allocation12], 1024
    $region65: #{_lambda_.1} parent=1 // pred_fallthru
      _
    // Predicated region
    $region66: #{_lambda_.1} parent=1 // pred_check
      _
    $region67: #{_lambda_.1} parent=1 // pred_check_branch
      %156 = sbr.rel (0) target = $region69
    $region68: #{_lambda_.1} parent=1 // pred_region
      %157 = dma.done [#allocation12], 1024
    $region69: #{_lambda_.1} parent=1 // pred_fallthru
      _
    // Predicated region
    $region70: #{_lambda_.1} parent=1 // pred_check
      _
    $region71: #{_lambda_.1} parent=1 // pred_check_branch
      %159 = sbr.rel (0) target = $region73
    $region72: #{_lambda_.1} parent=1 // pred_region
      %160 = dma.done [#allocation15], 1024
    $region73: #{_lambda_.1} parent=1 // pred_fallthru
      _
    // Predicated region
    $region74: #{_lambda_.1} parent=1 // pred_check
      _
    $region75: #{_lambda_.1} parent=1 // pred_check_branch
      %162 = sbr.rel (0) target = $region77
    $region76: #{_lambda_.1} parent=1 // pred_region
      %163 = dma.done [#allocation15], 1024
    $region77: #{_lambda_.1} parent=1 // pred_fallthru
      _
    %v165 = vld [vmem:[#allocation2] sm:$0xff]
    %v166 = vld [vmem:[#allocation2 + $0x8] sm:$0xff]
    %v167 = vpack.c.bf16 %v166, %v165
    %v168 = vld [vmem:[#allocation5] sm:$0xff]
    %v169 = vld [vmem:[#allocation5 + $0x8] sm:$0xff]
    %v170 = vpack.c.bf16 %v169, %v168
    %v171 = vld [vmem:[#allocation7] sm:$0xf]
    %v172 = vld [vmem:[#allocation7 + $0x4] sm:$0xf]
    %v175 = vunpack.c.l.b16 %v171
    %v176 = vunpack.c.l.b16 %v172
    %v177 = vpack.c.b16 %v176, %v175
    %vm179 = vcmask 130048
    %v181 = vsel %vm179, %v167, 0
    %183 = vmatprep.subr.bf16.mxu0 0
    %184 = vmatpush1.bf16.msra.mxu0 %v177
    %185 = vmatprep.subr.bf16.mxu0 0
    %186 = vmatpush1.bf16.msra.mxu0 0
    %187 = vmatprep.subr.bf16.mxu0 0
    %188 = vmatpush1.bf16.msra.mxu0 0
    %189 = vmatprep.subr.bf16.mxu0 0
    %190 = vmatpush1.bf16.msra.mxu0 0
    %191 = vmatprep.subr.bf16.mxu0 0
    %192 = vmatpush1.bf16.msra.mxu0 0
    %193 = vmatprep.subr.bf16.mxu0 0
    %194 = vmatpush1.bf16.msra.mxu0 0
    %195 = vmatprep.subr.bf16.mxu0 0
    %196 = vmatpush1.bf16.msra.mxu0 0
    %197 = vmatprep.subr.bf16.mxu0 0
    %198 = vmatpush1.bf16.msra.mxu0 0
    %199 = vmatprep.subr.bf16.mxu0 0
    %200 = vmatpush1.bf16.msra.mxu0 0
    %201 = vmatprep.subr.bf16.mxu0 0
    %202 = vmatpush1.bf16.msra.mxu0 0
    %203 = vmatprep.subr.bf16.mxu0 0
    %204 = vmatpush1.bf16.msra.mxu0 0
    %205 = vmatprep.subr.bf16.mxu0 0
    %206 = vmatpush1.bf16.msra.mxu0 0
    %207 = vmatprep.subr.bf16.mxu0 0
    %208 = vmatpush1.bf16.msra.mxu0 0
    %209 = vmatprep.subr.bf16.mxu0 0
    %210 = vmatpush1.bf16.msra.mxu0 0
    %211 = vmatprep.subr.bf16.mxu0 0
    %212 = vmatpush1.bf16.msra.mxu0 0
    %213 = vmatprep.subr.bf16.mxu0 0
    %214 = vmatpush1.bf16.msra.mxu0 0
    %215 = vmatprep.mubr.bf16.mxu0 0
    %216 = vmatmul.mubr.bf16.gmra.mrb[0].mxu0 %v181
    %v217 = vpop.f32.mrb[0].mxu0
    %v218 = vadd.f32 0.0, %v217
    %v219 = vpop.f32.mrb[0].mxu0
    %v220 = vpop.f32.mrb[0].mxu0
    %v221 = vadd.f32 0.0, %v220
    %v222 = vpop.f32.mrb[0].mxu0
    %223 = vdwg.mxu0
    %v224 = vmax.f32 %v218, 0.0
    %v225 = vmax.f32 %v221, 0.0
    %v226 = vpack.c.bf16 %v225, %v224
    %v227 = vld [vmem:[#allocation8] sm:$0xf]
    %v228 = vld [vmem:[#allocation8 + $0x4] sm:$0xf]
    %v229 = vld [vmem:[#allocation8 + $0x8] sm:$0xf]
    %v230 = vld [vmem:[#allocation8 + $0xc] sm:$0xf]
    %v231 = vld [vmem:[#allocation8 + $0x10] sm:$0xf]
    %v232 = vld [vmem:[#allocation8 + $0x14] sm:$0xf]
    %v233 = vld [vmem:[#allocation8 + $0x18] sm:$0xf]
    %v234 = vld [vmem:[#allocation8 + $0x1c] sm:$0xf]
    %v235 = vld [vmem:[#allocation8 + $0x20] sm:$0xf]
    %v236 = vld [vmem:[#allocation8 + $0x24] sm:$0xf]
    %v237 = vld [vmem:[#allocation8 + $0x28] sm:$0xf]
    %v238 = vld [vmem:[#allocation8 + $0x2c] sm:$0xf]
    %v239 = vld [vmem:[#allocation8 + $0x30] sm:$0xf]
    %v240 = vld [vmem:[#allocation8 + $0x34] sm:$0xf]
    %v241 = vld [vmem:[#allocation8 + $0x38] sm:$0xf]
    %v242 = vld [vmem:[#allocation8 + $0x3c] sm:$0xf]
    %v259 = vunpack.c.l.b16 %v227
    %v260 = vunpack.c.l.b16 %v228
    %v261 = vunpack.c.l.b16 %v229
    %v262 = vunpack.c.l.b16 %v230
    %v263 = vunpack.c.l.b16 %v231
    %v264 = vunpack.c.l.b16 %v232
    %v265 = vunpack.c.l.b16 %v233
    %v266 = vunpack.c.l.b16 %v234
    %v267 = vunpack.c.l.b16 %v235
    %v268 = vunpack.c.l.b16 %v236
    %v269 = vunpack.c.l.b16 %v237
    %v270 = vunpack.c.l.b16 %v238
    %v271 = vunpack.c.l.b16 %v239
    %v272 = vunpack.c.l.b16 %v240
    %v273 = vunpack.c.l.b16 %v241
    %v274 = vunpack.c.l.b16 %v242
    %v275 = vpack.c.b16 %v260, %v259
    %v276 = vpack.c.b16 %v262, %v261
    %v277 = vpack.c.b16 %v264, %v263
    %v278 = vpack.c.b16 %v266, %v265
    %v279 = vpack.c.b16 %v268, %v267
    %v280 = vpack.c.b16 %v270, %v269
    %v281 = vpack.c.b16 %v272, %v271
    %v282 = vpack.c.b16 %v274, %v273
    %291 = vmatprep.subr.bf16.mxu0 0
    %292 = vmatpush1.bf16.msra.mxu0 %v275
    %293 = vmatprep.subr.bf16.mxu0 0
    %294 = vmatpush1.bf16.msra.mxu0 %v276
    %295 = vmatprep.subr.bf16.mxu0 0
    %296 = vmatpush1.bf16.msra.mxu0 %v277
    %297 = vmatprep.subr.bf16.mxu0 0
    %298 = vmatpush1.bf16.msra.mxu0 %v278
    %299 = vmatprep.subr.bf16.mxu0 0
    %300 = vmatpush1.bf16.msra.mxu0 %v279
    %301 = vmatprep.subr.bf16.mxu0 0
    %302 = vmatpush1.bf16.msra.mxu0 %v280
    %303 = vmatprep.subr.bf16.mxu0 0
    %304 = vmatpush1.bf16.msra.mxu0 %v281
    %305 = vmatprep.subr.bf16.mxu0 0
    %306 = vmatpush1.bf16.msra.mxu0 %v282
    %307 = vmatprep.subr.bf16.mxu0 0
    %308 = vmatpush1.bf16.msra.mxu0 0
    %309 = vmatprep.subr.bf16.mxu0 0
    %310 = vmatpush1.bf16.msra.mxu0 0
    %311 = vmatprep.subr.bf16.mxu0 0
    %312 = vmatpush1.bf16.msra.mxu0 0
    %313 = vmatprep.subr.bf16.mxu0 0
    %314 = vmatpush1.bf16.msra.mxu0 0
    %315 = vmatprep.subr.bf16.mxu0 0
    %316 = vmatpush1.bf16.msra.mxu0 0
    %317 = vmatprep.subr.bf16.mxu0 0
    %318 = vmatpush1.bf16.msra.mxu0 0
    %319 = vmatprep.subr.bf16.mxu0 0
    %320 = vmatpush1.bf16.msra.mxu0 0
    %321 = vmatprep.subr.bf16.mxu0 0
    %322 = vmatpush1.bf16.msra.mxu0 0
    %323 = vmatprep.mubr.bf16.mxu0 0
    %324 = vmatmul.mubr.bf16.gmra.mrb[0].mxu0 %v226
    %v325 = vpop.f32.mrb[0].mxu0
    %v326 = vadd.f32 0.0, %v325
    %v327 = vpop.f32.mrb[0].mxu0
    %v328 = vpop.f32.mrb[0].mxu0
    %v329 = vadd.f32 0.0, %v328
    %v330 = vpop.f32.mrb[0].mxu0
    %331 = vdwg.mxu0
    %v332 = vpack.c.bf16 %v329, %v326
    %v334 = vcombine.high %v332, %v332
    %v336 = vunpack.c.l.s4 1966171168
    %v337 = vunpack.c.0.s8 %v336
    %v338 = vlaneseq
    %v339 = vshrl.u32 %v338, 7
    %v340 = vsub.s32 %v337, %v339
    %v341 = vrot.slane %v332, %v340
    %v343 = vunpack.c.l.s4 1966171168
    %v344 = vunpack.c.0.s8 %v343
    %v345 = vlaneseq
    %v346 = vshrl.u32 %v345, 7
    %v347 = vsub.s32 %v344, %v346
    %v348 = vrot.slane %v334, %v347
    %v349 = vcombine.high %v341, %v341
    %v350 = vcombine.high %v348, %v348
    %v352 = vunpack.c.l.s4 1966171168
    %v353 = vunpack.c.0.s8 %v352
    %v354 = vlaneseq
    %v355 = vshrl.u32 %v354, 7
    %v356 = vsub.s32 %v353, %v355
    %v357 = vrot.slane %v341, %v356
    %v359 = vunpack.c.l.s4 1966171168
    %v360 = vunpack.c.0.s8 %v359
    %v361 = vlaneseq
    %v362 = vshrl.u32 %v361, 7
    %v363 = vsub.s32 %v360, %v362
    %v364 = vrot.slane %v348, %v363
    %v366 = vunpack.c.l.s4 1966171168
    %v367 = vunpack.c.0.s8 %v366
    %v368 = vlaneseq
    %v369 = vshrl.u32 %v368, 7
    %v370 = vsub.s32 %v367, %v369
    %v371 = vrot.slane %v349, %v370
    %v373 = vunpack.c.l.s4 1966171168
    %v374 = vunpack.c.0.s8 %v373
    %v375 = vlaneseq
    %v376 = vshrl.u32 %v375, 7
    %v377 = vsub.s32 %v374, %v376
    %v378 = vrot.slane %v350, %v377
    %v379 = vcombine.high %v357, %v357
    %v380 = vcombine.high %v364, %v364
    %v381 = vcombine.high %v371, %v371
    %v382 = vcombine.high %v378, %v378
    %391 = vst [vmem:[#allocation17] sm:$0x1] %v357
    %392 = vst [vmem:[#allocation17 + $0x1] sm:$0x1] %v371
    %393 = vst [vmem:[#allocation17 + $0x2] sm:$0x1] %v379
    %394 = vst [vmem:[#allocation17 + $0x3] sm:$0x1] %v381
    %395 = vst [vmem:[#allocation17 + $0x4] sm:$0x1] %v364
    %396 = vst [vmem:[#allocation17 + $0x5] sm:$0x1] %v378
    %397 = vst [vmem:[#allocation17 + $0x6] sm:$0x1] %v380
    %398 = vst [vmem:[#allocation17 + $0x7] sm:$0x1] %v382
    %v399 = vld [vmem:[#allocation13] sm:$0xf]
    %v400 = vld [vmem:[#allocation13 + $0x4] sm:$0xf]
    %v401 = vld [vmem:[#allocation13 + $0x8] sm:$0xf]
    %v402 = vld [vmem:[#allocation13 + $0xc] sm:$0xf]
    %v403 = vld [vmem:[#allocation13 + $0x10] sm:$0xf]
    %v404 = vld [vmem:[#allocation13 + $0x14] sm:$0xf]
    %v405 = vld [vmem:[#allocation13 + $0x18] sm:$0xf]
    %v406 = vld [vmem:[#allocation13 + $0x1c] sm:$0xf]
    %v407 = vld [vmem:[#allocation13 + $0x20] sm:$0xf]
    %v408 = vld [vmem:[#allocation13 + $0x24] sm:$0xf]
    %v409 = vld [vmem:[#allocation13 + $0x28] sm:$0xf]
    %v410 = vld [vmem:[#allocation13 + $0x2c] sm:$0xf]
    %v411 = vld [vmem:[#allocation13 + $0x30] sm:$0xf]
    %v412 = vld [vmem:[#allocation13 + $0x34] sm:$0xf]
    %v413 = vld [vmem:[#allocation13 + $0x38] sm:$0xf]
    %v414 = vld [vmem:[#allocation13 + $0x3c] sm:$0xf]
    %v431 = vunpack.c.l.b16 %v399
    %v432 = vunpack.c.l.b16 %v400
    %v433 = vunpack.c.l.b16 %v401
    %v434 = vunpack.c.l.b16 %v402
    %v435 = vunpack.c.l.b16 %v403
    %v436 = vunpack.c.l.b16 %v404
    %v437 = vunpack.c.l.b16 %v405
    %v438 = vunpack.c.l.b16 %v406
    %v439 = vunpack.c.l.b16 %v407
    %v440 = vunpack.c.l.b16 %v408
    %v441 = vunpack.c.l.b16 %v409
    %v442 = vunpack.c.l.b16 %v410
    %v443 = vunpack.c.l.b16 %v411
    %v444 = vunpack.c.l.b16 %v412
    %v445 = vunpack.c.l.b16 %v413
    %v446 = vunpack.c.l.b16 %v414
    %v447 = vpack.c.b16 %v432, %v431
    %v448 = vpack.c.b16 %v434, %v433
    %v449 = vpack.c.b16 %v436, %v435
    %v450 = vpack.c.b16 %v438, %v437
    %v451 = vpack.c.b16 %v440, %v439
    %v452 = vpack.c.b16 %v442, %v441
    %v453 = vpack.c.b16 %v444, %v443
    %v454 = vpack.c.b16 %v446, %v445
    %463 = vmatprep.subr.bf16.mxu0 0
    %464 = vmatpush1.bf16.msra.mxu0 %v447
    %465 = vmatprep.subr.bf16.mxu0 0
    %466 = vmatpush1.bf16.msra.mxu0 %v448
    %467 = vmatprep.subr.bf16.mxu0 0
    %468 = vmatpush1.bf16.msra.mxu0 %v449
    %469 = vmatprep.subr.bf16.mxu0 0
    %470 = vmatpush1.bf16.msra.mxu0 %v450
    %471 = vmatprep.subr.bf16.mxu0 0
    %472 = vmatpush1.bf16.msra.mxu0 %v451
    %473 = vmatprep.subr.bf16.mxu0 0
    %474 = vmatpush1.bf16.msra.mxu0 %v452
    %475 = vmatprep.subr.bf16.mxu0 0
    %476 = vmatpush1.bf16.msra.mxu0 %v453
    %477 = vmatprep.subr.bf16.mxu0 0
    %478 = vmatpush1.bf16.msra.mxu0 %v454
    %479 = vmatprep.subr.bf16.mxu0 0
    %480 = vmatpush1.bf16.msra.mxu0 0
    %481 = vmatprep.subr.bf16.mxu0 0
    %482 = vmatpush1.bf16.msra.mxu0 0
    %483 = vmatprep.subr.bf16.mxu0 0
    %484 = vmatpush1.bf16.msra.mxu0 0
    %485 = vmatprep.subr.bf16.mxu0 0
    %486 = vmatpush1.bf16.msra.mxu0 0
    %487 = vmatprep.subr.bf16.mxu0 0
    %488 = vmatpush1.bf16.msra.mxu0 0
    %489 = vmatprep.subr.bf16.mxu0 0
    %490 = vmatpush1.bf16.msra.mxu0 0
    %491 = vmatprep.subr.bf16.mxu0 0
    %492 = vmatpush1.bf16.msra.mxu0 0
    %493 = vmatprep.subr.bf16.mxu0 0
    %494 = vmatpush1.bf16.msra.mxu0 0
    %495 = vmatprep.mubr.bf16.mxu0 0
    %496 = vmatmul.mubr.bf16.gmra.mrb[0].mxu0 %v332
    %v497 = vpop.f32.mrb[0].mxu0
    %v498 = vadd.f32 0.0, %v497
    %v499 = vpop.f32.mrb[0].mxu0
    %v500 = vpop.f32.mrb[0].mxu0
    %v501 = vadd.f32 0.0, %v500
    %v502 = vpop.f32.mrb[0].mxu0
    %503 = vdwg.mxu0
    %v504 = vmax.f32 %v498, 0.0
    %v505 = vmax.f32 %v501, 0.0
    %v506 = vpack.c.bf16 %v505, %v504
    %v507 = vld [vmem:[#allocation14] sm:$0xf]
    %v508 = vld [vmem:[#allocation14 + $0x4] sm:$0xf]
    %v509 = vld [vmem:[#allocation14 + $0x8] sm:$0xf]
    %v510 = vld [vmem:[#allocation14 + $0xc] sm:$0xf]
    %v511 = vld [vmem:[#allocation14 + $0x10] sm:$0xf]
    %v512 = vld [vmem:[#allocation14 + $0x14] sm:$0xf]
    %v513 = vld [vmem:[#allocation14 + $0x18] sm:$0xf]
    %v514 = vld [vmem:[#allocation14 + $0x1c] sm:$0xf]
    %v515 = vld [vmem:[#allocation14 + $0x20] sm:$0xf]
    %v516 = vld [vmem:[#allocation14 + $0x24] sm:$0xf]
    %v517 = vld [vmem:[#allocation14 + $0x28] sm:$0xf]
    %v518 = vld [vmem:[#allocation14 + $0x2c] sm:$0xf]
    %v519 = vld [vmem:[#allocation14 + $0x30] sm:$0xf]
    %v520 = vld [vmem:[#allocation14 + $0x34] sm:$0xf]
    %v521 = vld [vmem:[#allocation14 + $0x38] sm:$0xf]
    %v522 = vld [vmem:[#allocation14 + $0x3c] sm:$0xf]
    %v539 = vunpack.c.l.b16 %v507
    %v540 = vunpack.c.l.b16 %v508
    %v541 = vunpack.c.l.b16 %v509
    %v542 = vunpack.c.l.b16 %v510
    %v543 = vunpack.c.l.b16 %v511
    %v544 = vunpack.c.l.b16 %v512
    %v545 = vunpack.c.l.b16 %v513
    %v546 = vunpack.c.l.b16 %v514
    %v547 = vunpack.c.l.b16 %v515
    %v548 = vunpack.c.l.b16 %v516
    %v549 = vunpack.c.l.b16 %v517
    %v550 = vunpack.c.l.b16 %v518
    %v551 = vunpack.c.l.b16 %v519
    %v552 = vunpack.c.l.b16 %v520
    %v553 = vunpack.c.l.b16 %v521
    %v554 = vunpack.c.l.b16 %v522
    %v555 = vpack.c.b16 %v540, %v539
    %v556 = vpack.c.b16 %v542, %v541
    %v557 = vpack.c.b16 %v544, %v543
    %v558 = vpack.c.b16 %v546, %v545
    %v559 = vpack.c.b16 %v548, %v547
    %v560 = vpack.c.b16 %v550, %v549
    %v561 = vpack.c.b16 %v552, %v551
    %v562 = vpack.c.b16 %v554, %v553
    %571 = vmatprep.subr.bf16.mxu0 0
    %572 = vmatpush1.bf16.msra.mxu0 %v555
    %573 = vmatprep.subr.bf16.mxu0 0
    %574 = vmatpush1.bf16.msra.mxu0 %v556
    %575 = vmatprep.subr.bf16.mxu0 0
    %576 = vmatpush1.bf16.msra.mxu0 %v557
    %577 = vmatprep.subr.bf16.mxu0 0
    %578 = vmatpush1.bf16.msra.mxu0 %v558
    %579 = vmatprep.subr.bf16.mxu0 0
    %580 = vmatpush1.bf16.msra.mxu0 %v559
    %581 = vmatprep.subr.bf16.mxu0 0
    %582 = vmatpush1.bf16.msra.mxu0 %v560
    %583 = vmatprep.subr.bf16.mxu0 0
    %584 = vmatpush1.bf16.msra.mxu0 %v561
    %585 = vmatprep.subr.bf16.mxu0 0
    %586 = vmatpush1.bf16.msra.mxu0 %v562
    %587 = vmatprep.subr.bf16.mxu0 0
    %588 = vmatpush1.bf16.msra.mxu0 0
    %589 = vmatprep.subr.bf16.mxu0 0
    %590 = vmatpush1.bf16.msra.mxu0 0
    %591 = vmatprep.subr.bf16.mxu0 0
    %592 = vmatpush1.bf16.msra.mxu0 0
    %593 = vmatprep.subr.bf16.mxu0 0
    %594 = vmatpush1.bf16.msra.mxu0 0
    %595 = vmatprep.subr.bf16.mxu0 0
    %596 = vmatpush1.bf16.msra.mxu0 0
    %597 = vmatprep.subr.bf16.mxu0 0
    %598 = vmatpush1.bf16.msra.mxu0 0
    %599 = vmatprep.subr.bf16.mxu0 0
    %600 = vmatpush1.bf16.msra.mxu0 0
    %601 = vmatprep.subr.bf16.mxu0 0
    %602 = vmatpush1.bf16.msra.mxu0 0
    %603 = vmatprep.mubr.bf16.mxu0 0
    %604 = vmatmul.mubr.bf16.gmra.mrb[0].mxu0 %v506
    %v605 = vpop.f32.mrb[0].mxu0
    %v606 = vadd.f32 0.0, %v605
    %v607 = vpop.f32.mrb[0].mxu0
    %v608 = vpop.f32.mrb[0].mxu0
    %v609 = vadd.f32 0.0, %v608
    %v610 = vpop.f32.mrb[0].mxu0
    %611 = vdwg.mxu0
    %v612 = vpack.c.bf16 %v609, %v606
    %v614 = vcombine.high %v612, %v612
    %v616 = vunpack.c.l.s4 1966171168
    %v617 = vunpack.c.0.s8 %v616
    %v618 = vlaneseq
    %v619 = vshrl.u32 %v618, 7
    %v620 = vsub.s32 %v617, %v619
    %v621 = vrot.slane %v612, %v620
    %v623 = vunpack.c.l.s4 1966171168
    %v624 = vunpack.c.0.s8 %v623
    %v625 = vlaneseq
    %v626 = vshrl.u32 %v625, 7
    %v627 = vsub.s32 %v624, %v626
    %v628 = vrot.slane %v614, %v627
    %v629 = vcombine.high %v621, %v621
    %v630 = vcombine.high %v628, %v628
    %v632 = vunpack.c.l.s4 1966171168
    %v633 = vunpack.c.0.s8 %v632
    %v634 = vlaneseq
    %v635 = vshrl.u32 %v634, 7
    %v636 = vsub.s32 %v633, %v635
    %v637 = vrot.slane %v621, %v636
    %v639 = vunpack.c.l.s4 1966171168
    %v640 = vunpack.c.0.s8 %v639
    %v641 = vlaneseq
    %v642 = vshrl.u32 %v641, 7
    %v643 = vsub.s32 %v640, %v642
    %v644 = vrot.slane %v628, %v643
    %v646 = vunpack.c.l.s4 1966171168
    %v647 = vunpack.c.0.s8 %v646
    %v648 = vlaneseq
    %v649 = vshrl.u32 %v648, 7
    %v650 = vsub.s32 %v647, %v649
    %v651 = vrot.slane %v629, %v650
    %v653 = vunpack.c.l.s4 1966171168
    %v654 = vunpack.c.0.s8 %v653
    %v655 = vlaneseq
    %v656 = vshrl.u32 %v655, 7
    %v657 = vsub.s32 %v654, %v656
    %v658 = vrot.slane %v630, %v657
    %v659 = vcombine.high %v637, %v637
    %v660 = vcombine.high %v644, %v644
    %v661 = vcombine.high %v651, %v651
    %v662 = vcombine.high %v658, %v658
    %671 = vst [vmem:[#allocation20] sm:$0x1] %v637
    %672 = vst [vmem:[#allocation20 + $0x1] sm:$0x1] %v651
    %673 = vst [vmem:[#allocation20 + $0x2] sm:$0x1] %v659
    %674 = vst [vmem:[#allocation20 + $0x3] sm:$0x1] %v661
    %675 = vst [vmem:[#allocation20 + $0x4] sm:$0x1] %v644
    %676 = vst [vmem:[#allocation20 + $0x5] sm:$0x1] %v658
    %677 = vst [vmem:[#allocation20 + $0x6] sm:$0x1] %v660
    %678 = vst [vmem:[#allocation20 + $0x7] sm:$0x1] %v662
    %v679 = vld [vmem:[#allocation10] sm:$0xf]
    %v680 = vld [vmem:[#allocation10 + $0x4] sm:$0xf]
    %v683 = vunpack.c.l.b16 %v679
    %v684 = vunpack.c.l.b16 %v680
    %v685 = vpack.c.b16 %v684, %v683
    %v688 = vsel %vm179, %v170, 0
    %690 = vmatprep.subr.bf16.mxu0 0
    %691 = vmatpush1.bf16.msra.mxu0 %v685
    %692 = vmatprep.subr.bf16.mxu0 0
    %693 = vmatpush1.bf16.msra.mxu0 0
    %694 = vmatprep.subr.bf16.mxu0 0
    %695 = vmatpush1.bf16.msra.mxu0 0
    %696 = vmatprep.subr.bf16.mxu0 0
    %697 = vmatpush1.bf16.msra.mxu0 0
    %698 = vmatprep.subr.bf16.mxu0 0
    %699 = vmatpush1.bf16.msra.mxu0 0
    %700 = vmatprep.subr.bf16.mxu0 0
    %701 = vmatpush1.bf16.msra.mxu0 0
    %702 = vmatprep.subr.bf16.mxu0 0
    %703 = vmatpush1.bf16.msra.mxu0 0
    %704 = vmatprep.subr.bf16.mxu0 0
    %705 = vmatpush1.bf16.msra.mxu0 0
    %706 = vmatprep.subr.bf16.mxu0 0
    %707 = vmatpush1.bf16.msra.mxu0 0
    %708 = vmatprep.subr.bf16.mxu0 0
    %709 = vmatpush1.bf16.msra.mxu0 0
    %710 = vmatprep.subr.bf16.mxu0 0
    %711 = vmatpush1.bf16.msra.mxu0 0
    %712 = vmatprep.subr.bf16.mxu0 0
    %713 = vmatpush1.bf16.msra.mxu0 0
    %714 = vmatprep.subr.bf16.mxu0 0
    %715 = vmatpush1.bf16.msra.mxu0 0
    %716 = vmatprep.subr.bf16.mxu0 0
    %717 = vmatpush1.bf16.msra.mxu0 0
    %718 = vmatprep.subr.bf16.mxu0 0
    %719 = vmatpush1.bf16.msra.mxu0 0
    %720 = vmatprep.subr.bf16.mxu0 0
    %721 = vmatpush1.bf16.msra.mxu0 0
    %722 = vmatprep.mubr.bf16.mxu0 0
    %723 = vmatmul.mubr.bf16.gmra.mrb[0].mxu0 %v688
    %v724 = vpop.f32.mrb[0].mxu0
    %v725 = vadd.f32 0.0, %v724
    %v726 = vpop.f32.mrb[0].mxu0
    %v727 = vpop.f32.mrb[0].mxu0
    %v728 = vadd.f32 0.0, %v727
    %v729 = vpop.f32.mrb[0].mxu0
    %730 = vdwg.mxu0
    %v731 = vmax.f32 %v725, 0.0
    %v732 = vmax.f32 %v728, 0.0
    %v733 = vpack.c.bf16 %v732, %v731
    %v734 = vld [vmem:[#allocation11] sm:$0xf]
    %v735 = vld [vmem:[#allocation11 + $0x4] sm:$0xf]
    %v736 = vld [vmem:[#allocation11 + $0x8] sm:$0xf]
    %v737 = vld [vmem:[#allocation11 + $0xc] sm:$0xf]
    %v738 = vld [vmem:[#allocation11 + $0x10] sm:$0xf]
    %v739 = vld [vmem:[#allocation11 + $0x14] sm:$0xf]
    %v740 = vld [vmem:[#allocation11 + $0x18] sm:$0xf]
    %v741 = vld [vmem:[#allocation11 + $0x1c] sm:$0xf]
    %v742 = vld [vmem:[#allocation11 + $0x20] sm:$0xf]
    %v743 = vld [vmem:[#allocation11 + $0x24] sm:$0xf]
    %v744 = vld [vmem:[#allocation11 + $0x28] sm:$0xf]
    %v745 = vld [vmem:[#allocation11 + $0x2c] sm:$0xf]
    %v746 = vld [vmem:[#allocation11 + $0x30] sm:$0xf]
    %v747 = vld [vmem:[#allocation11 + $0x34] sm:$0xf]
    %v748 = vld [vmem:[#allocation11 + $0x38] sm:$0xf]
    %v749 = vld [vmem:[#allocation11 + $0x3c] sm:$0xf]
    %v766 = vunpack.c.l.b16 %v734
    %v767 = vunpack.c.l.b16 %v735
    %v768 = vunpack.c.l.b16 %v736
    %v769 = vunpack.c.l.b16 %v737
    %v770 = vunpack.c.l.b16 %v738
    %v771 = vunpack.c.l.b16 %v739
    %v772 = vunpack.c.l.b16 %v740
    %v773 = vunpack.c.l.b16 %v741
    %v774 = vunpack.c.l.b16 %v742
    %v775 = vunpack.c.l.b16 %v743
    %v776 = vunpack.c.l.b16 %v744
    %v777 = vunpack.c.l.b16 %v745
    %v778 = vunpack.c.l.b16 %v746
    %v779 = vunpack.c.l.b16 %v747
    %v780 = vunpack.c.l.b16 %v748
    %v781 = vunpack.c.l.b16 %v749
    %v782 = vpack.c.b16 %v767, %v766
    %v783 = vpack.c.b16 %v769, %v768
    %v784 = vpack.c.b16 %v771, %v770
    %v785 = vpack.c.b16 %v773, %v772
    %v786 = vpack.c.b16 %v775, %v774
    %v787 = vpack.c.b16 %v777, %v776
    %v788 = vpack.c.b16 %v779, %v778
    %v789 = vpack.c.b16 %v781, %v780
    %798 = vmatprep.subr.bf16.mxu0 0
    %799 = vmatpush1.bf16.msra.mxu0 %v782
    %800 = vmatprep.subr.bf16.mxu0 0
    %801 = vmatpush1.bf16.msra.mxu0 %v783
    %802 = vmatprep.subr.bf16.mxu0 0
    %803 = vmatpush1.bf16.msra.mxu0 %v784
    %804 = vmatprep.subr.bf16.mxu0 0
    %805 = vmatpush1.bf16.msra.mxu0 %v785
    %806 = vmatprep.subr.bf16.mxu0 0
    %807 = vmatpush1.bf16.msra.mxu0 %v786
    %808 = vmatprep.subr.bf16.mxu0 0
    %809 = vmatpush1.bf16.msra.mxu0 %v787
    %810 = vmatprep.subr.bf16.mxu0 0
    %811 = vmatpush1.bf16.msra.mxu0 %v788
    %812 = vmatprep.subr.bf16.mxu0 0
    %813 = vmatpush1.bf16.msra.mxu0 %v789
    %814 = vmatprep.subr.bf16.mxu0 0
    %815 = vmatpush1.bf16.msra.mxu0 0
    %816 = vmatprep.subr.bf16.mxu0 0
    %817 = vmatpush1.bf16.msra.mxu0 0
    %818 = vmatprep.subr.bf16.mxu0 0
    %819 = vmatpush1.bf16.msra.mxu0 0
    %820 = vmatprep.subr.bf16.mxu0 0
    %821 = vmatpush1.bf16.msra.mxu0 0
    %822 = vmatprep.subr.bf16.mxu0 0
    %823 = vmatpush1.bf16.msra.mxu0 0
    %824 = vmatprep.subr.bf16.mxu0 0
    %825 = vmatpush1.bf16.msra.mxu0 0
    %826 = vmatprep.subr.bf16.mxu0 0
    %827 = vmatpush1.bf16.msra.mxu0 0
    %828 = vmatprep.subr.bf16.mxu0 0
    %829 = vmatpush1.bf16.msra.mxu0 0
    %830 = vmatprep.mubr.bf16.mxu0 0
    %831 = vmatmul.mubr.bf16.gmra.mrb[0].mxu0 %v733
    %v832 = vpop.f32.mrb[0].mxu0
    %v833 = vadd.f32 0.0, %v832
    %v834 = vpop.f32.mrb[0].mxu0
    %v835 = vpop.f32.mrb[0].mxu0
    %v836 = vadd.f32 0.0, %v835
    %v837 = vpop.f32.mrb[0].mxu0
    %838 = vdwg.mxu0
    %v839 = vpack.c.bf16 %v836, %v833
    %v841 = vcombine.high %v839, %v839
    %v843 = vunpack.c.l.s4 1966171168
    %v844 = vunpack.c.0.s8 %v843
    %v845 = vlaneseq
    %v846 = vshrl.u32 %v845, 7
    %v847 = vsub.s32 %v844, %v846
    %v848 = vrot.slane %v839, %v847
    %v850 = vunpack.c.l.s4 1966171168
    %v851 = vunpack.c.0.s8 %v850
    %v852 = vlaneseq
    %v853 = vshrl.u32 %v852, 7
    %v854 = vsub.s32 %v851, %v853
    %v855 = vrot.slane %v841, %v854
    %v856 = vcombine.high %v848, %v848
    %v857 = vcombine.high %v855, %v855
    %v859 = vunpack.c.l.s4 1966171168
    %v860 = vunpack.c.0.s8 %v859
    %v861 = vlaneseq
    %v862 = vshrl.u32 %v861, 7
    %v863 = vsub.s32 %v860, %v862
    %v864 = vrot.slane %v848, %v863
    %v866 = vunpack.c.l.s4 1966171168
    %v867 = vunpack.c.0.s8 %v866
    %v868 = vlaneseq
    %v869 = vshrl.u32 %v868, 7
    %v870 = vsub.s32 %v867, %v869
    %v871 = vrot.slane %v855, %v870
    %v873 = vunpack.c.l.s4 1966171168
    %v874 = vunpack.c.0.s8 %v873
    %v875 = vlaneseq
    %v876 = vshrl.u32 %v875, 7
    %v877 = vsub.s32 %v874, %v876
    %v878 = vrot.slane %v856, %v877
    %v880 = vunpack.c.l.s4 1966171168
    %v881 = vunpack.c.0.s8 %v880
    %v882 = vlaneseq
    %v883 = vshrl.u32 %v882, 7
    %v884 = vsub.s32 %v881, %v883
    %v885 = vrot.slane %v857, %v884
    %v886 = vcombine.high %v864, %v864
    %v887 = vcombine.high %v871, %v871
    %v888 = vcombine.high %v878, %v878
    %v889 = vcombine.high %v885, %v885
    %898 = vst [vmem:[#allocation18] sm:$0x1] %v864
    %899 = vst [vmem:[#allocation18 + $0x1] sm:$0x1] %v878
    %900 = vst [vmem:[#allocation18 + $0x2] sm:$0x1] %v886
    %901 = vst [vmem:[#allocation18 + $0x3] sm:$0x1] %v888
    %902 = vst [vmem:[#allocation18 + $0x4] sm:$0x1] %v871
    %903 = vst [vmem:[#allocation18 + $0x5] sm:$0x1] %v885
    %904 = vst [vmem:[#allocation18 + $0x6] sm:$0x1] %v887
    %905 = vst [vmem:[#allocation18 + $0x7] sm:$0x1] %v889
    %v906 = vld [vmem:[#allocation16] sm:$0xf]
    %v907 = vld [vmem:[#allocation16 + $0x4] sm:$0xf]
    %v908 = vld [vmem:[#allocation16 + $0x8] sm:$0xf]
    %v909 = vld [vmem:[#allocation16 + $0xc] sm:$0xf]
    %v910 = vld [vmem:[#allocation16 + $0x10] sm:$0xf]
    %v911 = vld [vmem:[#allocation16 + $0x14] sm:$0xf]
    %v912 = vld [vmem:[#allocation16 + $0x18] sm:$0xf]
    %v913 = vld [vmem:[#allocation16 + $0x1c] sm:$0xf]
    %v914 = vld [vmem:[#allocation16 + $0x20] sm:$0xf]
    %v915 = vld [vmem:[#allocation16 + $0x24] sm:$0xf]
    %v916 = vld [vmem:[#allocation16 + $0x28] sm:$0xf]
    %v917 = vld [vmem:[#allocation16 + $0x2c] sm:$0xf]
    %v918 = vld [vmem:[#allocation16 + $0x30] sm:$0xf]
    %v919 = vld [vmem:[#allocation16 + $0x34] sm:$0xf]
    %v920 = vld [vmem:[#allocation16 + $0x38] sm:$0xf]
    %v921 = vld [vmem:[#allocation16 + $0x3c] sm:$0xf]
    %v938 = vunpack.c.l.b16 %v906
    %v939 = vunpack.c.l.b16 %v907
    %v940 = vunpack.c.l.b16 %v908
    %v941 = vunpack.c.l.b16 %v909
    %v942 = vunpack.c.l.b16 %v910
    %v943 = vunpack.c.l.b16 %v911
    %v944 = vunpack.c.l.b16 %v912
    %v945 = vunpack.c.l.b16 %v913
    %v946 = vunpack.c.l.b16 %v914
    %v947 = vunpack.c.l.b16 %v915
    %v948 = vunpack.c.l.b16 %v916
    %v949 = vunpack.c.l.b16 %v917
    %v950 = vunpack.c.l.b16 %v918
    %v951 = vunpack.c.l.b16 %v919
    %v952 = vunpack.c.l.b16 %v920
    %v953 = vunpack.c.l.b16 %v921
    %v954 = vpack.c.b16 %v939, %v938
    %v955 = vpack.c.b16 %v941, %v940
    %v956 = vpack.c.b16 %v943, %v942
    %v957 = vpack.c.b16 %v945, %v944
    %v958 = vpack.c.b16 %v947, %v946
    %v959 = vpack.c.b16 %v949, %v948
    %v960 = vpack.c.b16 %v951, %v950
    %v961 = vpack.c.b16 %v953, %v952
    %970 = vmatprep.subr.bf16.mxu0 0
    %971 = vmatpush1.bf16.msra.mxu0 %v954
    %972 = vmatprep.subr.bf16.mxu0 0
    %973 = vmatpush1.bf16.msra.mxu0 %v955
    %974 = vmatprep.subr.bf16.mxu0 0
    %975 = vmatpush1.bf16.msra.mxu0 %v956
    %976 = vmatprep.subr.bf16.mxu0 0
    %977 = vmatpush1.bf16.msra.mxu0 %v957
    %978 = vmatprep.subr.bf16.mxu0 0
    %979 = vmatpush1.bf16.msra.mxu0 %v958
    %980 = vmatprep.subr.bf16.mxu0 0
    %981 = vmatpush1.bf16.msra.mxu0 %v959
    %982 = vmatprep.subr.bf16.mxu0 0
    %983 = vmatpush1.bf16.msra.mxu0 %v960
    %984 = vmatprep.subr.bf16.mxu0 0
    %985 = vmatpush1.bf16.msra.mxu0 %v961
    %986 = vmatprep.subr.bf16.mxu0 0
    %987 = vmatpush1.bf16.msra.mxu0 0
    %988 = vmatprep.subr.bf16.mxu0 0
    %989 = vmatpush1.bf16.msra.mxu0 0
    %990 = vmatprep.subr.bf16.mxu0 0
    %991 = vmatpush1.bf16.msra.mxu0 0
    %992 = vmatprep.subr.bf16.mxu0 0
    %993 = vmatpush1.bf16.msra.mxu0 0
    %994 = vmatprep.subr.bf16.mxu0 0
    %995 = vmatpush1.bf16.msra.mxu0 0
    %996 = vmatprep.subr.bf16.mxu0 0
    %997 = vmatpush1.bf16.msra.mxu0 0
    %998 = vmatprep.subr.bf16.mxu0 0
    %999 = vmatpush1.bf16.msra.mxu0 0
    %1000 = vmatprep.subr.bf16.mxu0 0
    %1001 = vmatpush1.bf16.msra.mxu0 0
    %1002 = vmatprep.mubr.bf16.mxu0 0
    %1003 = vmatmul.mubr.bf16.gmra.mrb[0].mxu0 %v839
    %v1004 = vpop.f32.mrb[0].mxu0
    %v1005 = vadd.f32 0.0, %v1004
    %v1006 = vpop.f32.mrb[0].mxu0
    %v1007 = vpop.f32.mrb[0].mxu0
    %v1008 = vadd.f32 0.0, %v1007
    %v1009 = vpop.f32.mrb[0].mxu0
    %1010 = vdwg.mxu0
    %v1011 = vmax.f32 %v1005, 0.0
    %v1012 = vmax.f32 %v1008, 0.0
    %v1013 = vpack.c.bf16 %v1012, %v1011
    %v1014 = vld [vmem:[%s9] sm:$0xf]
    %v1015 = vld [vmem:[%s9 + $0x4] sm:$0xf]
    %v1016 = vld [vmem:[%s9 + $0x8] sm:$0xf]
    %v1017 = vld [vmem:[%s9 + $0xc] sm:$0xf]
    %v1018 = vld [vmem:[%s9 + $0x10] sm:$0xf]
    %v1019 = vld [vmem:[%s9 + $0x14] sm:$0xf]
    %v1020 = vld [vmem:[%s9 + $0x18] sm:$0xf]
    %v1021 = vld [vmem:[%s9 + $0x1c] sm:$0xf]
    %v1022 = vld [vmem:[%s9 + $0x20] sm:$0xf]
    %v1023 = vld [vmem:[%s9 + $0x24] sm:$0xf]
    %v1024 = vld [vmem:[%s9 + $0x28] sm:$0xf]
    %v1025 = vld [vmem:[%s9 + $0x2c] sm:$0xf]
    %v1026 = vld [vmem:[%s9 + $0x30] sm:$0xf]
    %v1027 = vld [vmem:[%s9 + $0x34] sm:$0xf]
    %v1028 = vld [vmem:[%s9 + $0x38] sm:$0xf]
    %v1029 = vld [vmem:[%s9 + $0x3c] sm:$0xf]
    %v1046 = vunpack.c.l.b16 %v1014
    %v1047 = vunpack.c.l.b16 %v1015
    %v1048 = vunpack.c.l.b16 %v1016
    %v1049 = vunpack.c.l.b16 %v1017
    %v1050 = vunpack.c.l.b16 %v1018
    %v1051 = vunpack.c.l.b16 %v1019
    %v1052 = vunpack.c.l.b16 %v1020
    %v1053 = vunpack.c.l.b16 %v1021
    %v1054 = vunpack.c.l.b16 %v1022
    %v1055 = vunpack.c.l.b16 %v1023
    %v1056 = vunpack.c.l.b16 %v1024
    %v1057 = vunpack.c.l.b16 %v1025
    %v1058 = vunpack.c.l.b16 %v1026
    %v1059 = vunpack.c.l.b16 %v1027
    %v1060 = vunpack.c.l.b16 %v1028
    %v1061 = vunpack.c.l.b16 %v1029
    %v1062 = vpack.c.b16 %v1047, %v1046
    %v1063 = vpack.c.b16 %v1049, %v1048
    %v1064 = vpack.c.b16 %v1051, %v1050
    %v1065 = vpack.c.b16 %v1053, %v1052
    %v1066 = vpack.c.b16 %v1055, %v1054
    %v1067 = vpack.c.b16 %v1057, %v1056
    %v1068 = vpack.c.b16 %v1059, %v1058
    %v1069 = vpack.c.b16 %v1061, %v1060
    %1078 = vmatprep.subr.bf16.mxu0 0
    %1079 = vmatpush1.bf16.msra.mxu0 %v1062
    %1080 = vmatprep.subr.bf16.mxu0 0
    %1081 = vmatpush1.bf16.msra.mxu0 %v1063
    %1082 = vmatprep.subr.bf16.mxu0 0
    %1083 = vmatpush1.bf16.msra.mxu0 %v1064
    %1084 = vmatprep.subr.bf16.mxu0 0
    %1085 = vmatpush1.bf16.msra.mxu0 %v1065
    %1086 = vmatprep.subr.bf16.mxu0 0
    %1087 = vmatpush1.bf16.msra.mxu0 %v1066
    %1088 = vmatprep.subr.bf16.mxu0 0
    %1089 = vmatpush1.bf16.msra.mxu0 %v1067
    %1090 = vmatprep.subr.bf16.mxu0 0
    %1091 = vmatpush1.bf16.msra.mxu0 %v1068
    %1092 = vmatprep.subr.bf16.mxu0 0
    %1093 = vmatpush1.bf16.msra.mxu0 %v1069
    %1094 = vmatprep.subr.bf16.mxu0 0
    %1095 = vmatpush1.bf16.msra.mxu0 0
    %1096 = vmatprep.subr.bf16.mxu0 0
    %1097 = vmatpush1.bf16.msra.mxu0 0
    %1098 = vmatprep.subr.bf16.mxu0 0
    %1099 = vmatpush1.bf16.msra.mxu0 0
    %1100 = vmatprep.subr.bf16.mxu0 0
    %1101 = vmatpush1.bf16.msra.mxu0 0
    %1102 = vmatprep.subr.bf16.mxu0 0
    %1103 = vmatpush1.bf16.msra.mxu0 0
    %1104 = vmatprep.subr.bf16.mxu0 0
    %1105 = vmatpush1.bf16.msra.mxu0 0
    %1106 = vmatprep.subr.bf16.mxu0 0
    %1107 = vmatpush1.bf16.msra.mxu0 0
    %1108 = vmatprep.subr.bf16.mxu0 0
    %1109 = vmatpush1.bf16.msra.mxu0 0
    %1110 = vmatprep.mubr.bf16.mxu0 0
    %1111 = vmatmul.mubr.bf16.gmra.mrb[0].mxu0 %v1013
    %v1112 = vpop.f32.mrb[0].mxu0
    %v1113 = vadd.f32 0.0, %v1112
    %v1114 = vpop.f32.mrb[0].mxu0
    %v1115 = vpop.f32.mrb[0].mxu0
    %v1116 = vadd.f32 0.0, %v1115
    %v1117 = vpop.f32.mrb[0].mxu0
    %1118 = vdwg.mxu0
    %v1119 = vpack.c.bf16 %v1116, %v1113
    %v1121 = vcombine.high %v1119, %v1119
    %v1123 = vunpack.c.l.s4 1966171168
    %v1124 = vunpack.c.0.s8 %v1123
    %v1125 = vlaneseq
    %v1126 = vshrl.u32 %v1125, 7
    %v1127 = vsub.s32 %v1124, %v1126
    %v1128 = vrot.slane %v1119, %v1127
    %v1130 = vunpack.c.l.s4 1966171168
    %v1131 = vunpack.c.0.s8 %v1130
    %v1132 = vlaneseq
    %v1133 = vshrl.u32 %v1132, 7
    %v1134 = vsub.s32 %v1131, %v1133
    %v1135 = vrot.slane %v1121, %v1134
    %v1136 = vcombine.high %v1128, %v1128
    %v1137 = vcombine.high %v1135, %v1135
    %v1139 = vunpack.c.l.s4 1966171168
    %v1140 = vunpack.c.0.s8 %v1139
    %v1141 = vlaneseq
    %v1142 = vshrl.u32 %v1141, 7
    %v1143 = vsub.s32 %v1140, %v1142
    %v1144 = vrot.slane %v1128, %v1143
    %v1146 = vunpack.c.l.s4 1966171168
    %v1147 = vunpack.c.0.s8 %v1146
    %v1148 = vlaneseq
    %v1149 = vshrl.u32 %v1148, 7
    %v1150 = vsub.s32 %v1147, %v1149
    %v1151 = vrot.slane %v1135, %v1150
    %v1153 = vunpack.c.l.s4 1966171168
    %v1154 = vunpack.c.0.s8 %v1153
    %v1155 = vlaneseq
    %v1156 = vshrl.u32 %v1155, 7
    %v1157 = vsub.s32 %v1154, %v1156
    %v1158 = vrot.slane %v1136, %v1157
    %v1160 = vunpack.c.l.s4 1966171168
    %v1161 = vunpack.c.0.s8 %v1160
    %v1162 = vlaneseq
    %v1163 = vshrl.u32 %v1162, 7
    %v1164 = vsub.s32 %v1161, %v1163
    %v1165 = vrot.slane %v1137, %v1164
    %v1166 = vcombine.high %v1144, %v1144
    %v1167 = vcombine.high %v1151, %v1151
    %v1168 = vcombine.high %v1158, %v1158
    %v1169 = vcombine.high %v1165, %v1165
    %1178 = vst [vmem:[#allocation21] sm:$0x1] %v1144
    %1179 = vst [vmem:[#allocation21 + $0x1] sm:$0x1] %v1158
    %1180 = vst [vmem:[#allocation21 + $0x2] sm:$0x1] %v1166
    %1181 = vst [vmem:[#allocation21 + $0x3] sm:$0x1] %v1168
    %1182 = vst [vmem:[#allocation21 + $0x4] sm:$0x1] %v1151
    %1183 = vst [vmem:[#allocation21 + $0x5] sm:$0x1] %v1165
    %1184 = vst [vmem:[#allocation21 + $0x6] sm:$0x1] %v1167
    %1185 = vst [vmem:[#allocation21 + $0x7] sm:$0x1] %v1169
    // Predicated region
    $region78: #{_lambda_.1} parent=1 // pred_check
      _
    $region79: #{_lambda_.1} parent=1 // pred_check_branch
      %1187 = sbr.rel (0) target = $region81
    $region80: #{_lambda_.1} parent=1 // pred_region
      %s1189 = ssub.s32 128, 16
      %1190 = vsyncadd [#allocation4], %s1189
      %s1191 = sshll.u32 [#allocation17], 4
      %s1192 = int_to_ptr.vmem [resolvable:$true] %s1191
      %1197 = dma.vmem_to_hbm [thread:$0]  %s1192, 16, %s10, [#allocation4], 16, 16, 1
    $region81: #{_lambda_.1} parent=1 // pred_fallthru
      _
    // Predicated region
    $region82: #{_lambda_.1} parent=1 // pred_check
      _
    $region83: #{_lambda_.1} parent=1 // pred_check_branch
      %1199 = sbr.rel (0) target = $region85
    $region84: #{_lambda_.1} parent=1 // pred_region
      %s1201 = ssub.s32 128, 16
      %1202 = vsyncadd [#allocation19], %s1201
      %s1203 = sshll.u32 [#allocation18], 4
      %s1204 = int_to_ptr.vmem [resolvable:$true] %s1203
      %1209 = dma.vmem_to_hbm [thread:$0]  %s1204, 16, %s11, [#allocation19], 16, 16, 1
    $region85: #{_lambda_.1} parent=1 // pred_fallthru
      _
    // Predicated region
    $region86: #{_lambda_.1} parent=1 // pred_check
      _
    $region87: #{_lambda_.1} parent=1 // pred_check_branch
      %1211 = sbr.rel (0) target = $region89
    $region88: #{_lambda_.1} parent=1 // pred_region
      %s1213 = ssub.s32 128, 16
      %1214 = vsyncadd [#allocation19], %s1213
      %s1215 = sshll.u32 [#allocation20], 4
      %s1216 = int_to_ptr.vmem [resolvable:$true] %s1215
      %1221 = dma.vmem_to_hbm [thread:$0]  %s1216, 16, %s12, [#allocation19], 16, 16, 1
    $region89: #{_lambda_.1} parent=1 // pred_fallthru
      _
    // Predicated region
    $region90: #{_lambda_.1} parent=1 // pred_check
      _
    $region91: #{_lambda_.1} parent=1 // pred_check_branch
      %1223 = sbr.rel (0) target = $region93
    $region92: #{_lambda_.1} parent=1 // pred_region
      %s1225 = ssub.s32 128, 16
      %1226 = vsyncadd [#allocation22], %s1225
      %s1227 = sshll.u32 [#allocation21], 4
      %s1228 = int_to_ptr.vmem [resolvable:$true] %s1227
      %1233 = dma.vmem_to_hbm [thread:$0]  %s1228, 16, %s13, [#allocation22], 16, 16, 1
    $region93: #{_lambda_.1} parent=1 // pred_fallthru
      _
    // Predicated region
    $region94: #{_lambda_.1} parent=1 // pred_check
      _
    $region95: #{_lambda_.1} parent=1 // pred_check_branch
      %1235 = sbr.rel (0) target = $region97
    $region96: #{_lambda_.1} parent=1 // pred_region
      %1236 = dma.done [#allocation4], 128
    $region97: #{_lambda_.1} parent=1 // pred_fallthru
      _
    // Predicated region
    $region98: #{_lambda_.1} parent=1 // pred_check
      _
    $region99: #{_lambda_.1} parent=1 // pred_check_branch
      %1238 = sbr.rel (0) target = $region101
    $region100: #{_lambda_.1} parent=1 // pred_region
      %1239 = dma.done [#allocation19], 128
    $region101: #{_lambda_.1} parent=1 // pred_fallthru
      _
    // Predicated region
    $region102: #{_lambda_.1} parent=1 // pred_check
      _
    $region103: #{_lambda_.1} parent=1 // pred_check_branch
      %1241 = sbr.rel (0) target = $region105
    $region104: #{_lambda_.1} parent=1 // pred_region
      %1242 = dma.done [#allocation19], 128
    $region105: #{_lambda_.1} parent=1 // pred_fallthru
      _
    // Predicated region
    $region106: #{_lambda_.1} parent=1 // pred_check
      _
    $region107: #{_lambda_.1} parent=1 // pred_check_branch
      %1244 = sbr.rel (0) target = $region109
    $region108: #{_lambda_.1} parent=1 // pred_region
      %1245 = dma.done [#allocation22], 128
    $region109: #{_lambda_.1} parent=1 // pred_fallthru
      _
    %1246 = vsyncpa [#allocation3], 1
    %1247 = vsyncpa [#allocation6], 1
    %1248 = vsyncpa [#allocation9], 1
    %1249 = vsyncpa [#allocation12], 1
    %1250 = vsyncpa [#allocation15], 1
    %1251 = vsyncpa [#allocation4], 1
    %1252 = vsyncpa [#allocation19], 1
    %1253 = vsyncpa [#allocation22], 1

</llo_original>
